<compile_context>
chip_gen: v5e
topology: v5e:2x2
jax: 0.10.0
libtpu: 0.0.40
codegen_flags: <defaults>
</compile_context>

<pallas_src>
import functools

import jax
import jax.numpy as jnp
import numpy as np
from jax import lax
from jax.experimental import pallas as pl
from jax.experimental.pallas import tpu as pltpu


def _inverted_residual_kernel(x_ref, w_ref, v_ref, o_ref, *, cb, length, tb):
    # Packed params (loaded once per grid step):
    w1 = w_ref[:, :cb]        # (cb, cb)  1x1 conv #1, BN1 scale folded in
    w3 = w_ref[:, cb:]        # (cb, cb)  1x1 conv #2, BN3 scale folded in
    wdw0 = v_ref[:, 0:1]      # (cb, 1)   depthwise taps, BN2 scale folded in
    wdw1 = v_ref[:, 1:2]
    wdw2 = v_ref[:, 2:3]
    b1 = v_ref[:, 3:4]        # (cb, 1)   BN shift vectors
    b2 = v_ref[:, 4:5]
    b3 = v_ref[:, 5:6]

    # Hoisted boundary masks for the k=3, pad=1 depthwise conv.
    col = lax.broadcasted_iota(jnp.int32, (cb, length), 1)
    not_first = col != 0
    not_last = col != length - 1
    zeros = jnp.zeros((cb, length), jnp.float32)

    # Static unroll over the batch block (tb is a small compile-time constant).
    for t in range(tb):
        x1 = x_ref[t, :cb, :]          # pass-through half
        x2 = x_ref[t, cb:, :]          # branch2 input half

        # 1x1 conv (BN1 folded) -> ReLU
        y = jnp.dot(w1, x2, preferred_element_type=jnp.float32)
        y = jnp.maximum(y + b1, 0.0)

        # depthwise conv k=3, stride=1, padding=1 (BN2 folded)
        y_prev = jnp.where(not_first, jnp.roll(y, 1, axis=1), zeros)   # x[l-1]
        y_next = jnp.where(not_last, jnp.roll(y, -1, axis=1), zeros)   # x[l+1]
        dw = wdw0 * y_prev + wdw1 * y + wdw2 * y_next + b2

        # 1x1 conv (BN3 folded) -> ReLU
        z = jnp.dot(w3, dw, preferred_element_type=jnp.float32)
        z = jnp.maximum(z + b3, 0.0)

        # Fused channel_shuffle(groups=2): the output array is (B, cb, 2L);
        # out[b, c, 0:L] = x1[c], out[b, c, L:2L] = z[c].  Row-major this is
        # exactly the shuffled (B, 2cb, L) tensor (channel 2c = x1[c],
        # channel 2c+1 = z[c]), so the wrapper reshape is free.
        o_ref[t, :, :length] = x1
        o_ref[t, :, length:] = z


def _pick_batch_block(batch, bytes_per_batch, target_bytes=2 << 20):
    """Largest divisor of `batch` whose input tile fits `target_bytes`,
    preferring >= 2 grid steps so both v7x TensorCores get work."""
    candidates = [d for d in range(1, batch + 1)
                  if batch % d == 0 and d * bytes_per_batch <= target_bytes]
    multi = [d for d in candidates if batch // d >= 2]
    return max(multi) if multi else max(candidates)


def inverted_residual_stride1(x, packed_params, *, tb=None):
    """x: (B, inp, L) float32, stride=1 (so inp == oup)."""
    B, inp, L = x.shape
    cb = inp // 2  # branch_features
    w_pack, v_pack = packed_params  # (cb, 2cb), (cb, 6)

    if tb is None:
        tb = _pick_batch_block(B, inp * L * 4)
    assert B % tb == 0
    grid = (B // tb,)

    kernel = functools.partial(_inverted_residual_kernel, cb=cb, length=L, tb=tb)

    out = pl.pallas_call(
        kernel,
        out_shape=jax.ShapeDtypeStruct((B, cb, 2 * L), jnp.float32),
        grid_spec=pltpu.PrefetchScalarGridSpec(
            num_scalar_prefetch=0,
            grid=grid,
            in_specs=[
                pl.BlockSpec((tb, inp, L), lambda g: (g, 0, 0)),   # x
                pl.BlockSpec(w_pack.shape, lambda g: (0, 0)),      # packed weights
                pl.BlockSpec(v_pack.shape, lambda g: (0, 0)),      # packed taps+biases
            ],
            out_specs=pl.BlockSpec((tb, cb, 2 * L), lambda g: (g, 0, 0)),
        ),
        compiler_params=pltpu.CompilerParams(
            dimension_semantics=("parallel",),
            vmem_limit_bytes=32 * 1024 * 1024),
    )(x, w_pack, v_pack)

    # channel_shuffle(groups=2) already fused into the output layout:
    # (B, cb, 2L) row-major == shuffled (B, 2cb, L); this reshape is a free view.
    return out.reshape(B, 2 * cb, L)


# ----------------------------- parameter helpers -----------------------------

def _fold_bn(gamma, beta, mean, var, eps=1e-5):
    scale = gamma / jnp.sqrt(var + eps)
    shift = beta - mean * scale
    return scale.astype(jnp.float32), shift.astype(jnp.float32)


def _make_raw_params(key, cb):
    """Raw conv weights + eval-mode BN (scale, shift) pairs."""
    ks = jax.random.split(key, 15)
    w1 = jax.random.normal(ks[0], (cb, cb), jnp.float32) * 0.2
    wdw = jax.random.normal(ks[1], (cb, 3), jnp.float32) * 0.3
    w3 = jax.random.normal(ks[2], (cb, cb), jnp.float32) * 0.2

    def bn(k0, k1, k2, k3):
        gamma = jax.random.uniform(k0, (cb,), jnp.float32, 0.5, 1.5)
        beta = jax.random.normal(k1, (cb,), jnp.float32) * 0.1
        mean = jax.random.normal(k2, (cb,), jnp.float32) * 0.1
        var = jax.random.uniform(k3, (cb,), jnp.float32, 0.5, 1.5)
        return _fold_bn(gamma, beta, mean, var)

    bn1 = bn(ks[3], ks[4], ks[5], ks[6])
    bn2 = bn(ks[7], ks[8], ks[9], ks[10])
    bn3 = bn(ks[11], ks[12], ks[13], ks[14])
    return w1, wdw, w3, bn1, bn2, bn3


def fold_and_pack_params(w1, wdw, w3, bn1, bn2, bn3):
    """Fold BN scales into conv weights; pack into 2 kernel refs."""
    (s1, b1), (s2, b2), (s3, b3) = bn1, bn2, bn3
    w_pack = jnp.concatenate([s1[:, None] * w1, s3[:, None] * w3], axis=1)   # (cb, 2cb)
    v_pack = jnp.concatenate(
        [s2[:, None] * wdw, b1[:, None], b2[:, None], b3[:, None]], axis=1)  # (cb, 6)
    return w_pack, v_pack


# --------------------------------- reference ---------------------------------

def _reference(x, raw_params):
    """Pure-JAX reference matching the PyTorch forward (stride=1, eval BN)."""
    B, inp, L = x.shape
    cb = inp // 2
    w1, wdw, w3, (s1, b1), (s2, b2), (s3, b3) = raw_params
    x1, x2 = x[:, :cb, :], x[:, cb:, :]

    y = jnp.einsum('oi,bil->bol', w1, x2)
    y = jnp.maximum(y * s1[None, :, None] + b1[None, :, None], 0.0)

    yp = jnp.pad(y, ((0, 0), (0, 0), (1, 1)))
    dw = (wdw[None, :, 0:1] * yp[:, :, 0:L]
          + wdw[None, :, 1:2] * yp[:, :, 1:L + 1]
          + wdw[None, :, 2:3] * yp[:, :, 2:L + 2])
    dw = dw * s2[None, :, None] + b2[None, :, None]

    z = jnp.einsum('oi,bil->bol', w3, dw)
    z = jnp.maximum(z * s3[None, :, None] + b3[None, :, None], 0.0)

    out = jnp.concatenate([x1, z], axis=1)
    out = out.reshape(B, 2, cb, L).transpose(0, 2, 1, 3).reshape(B, 2 * cb, L)
    return out


if __name__ == "__main__":
    B, inp, L = 8, 32, 128   # stride = 1 => inp == oup, branch_features = 16
    cb = inp // 2

    key = jax.random.PRNGKey(0)
    kx, kp = jax.random.split(key)
    x = jax.random.normal(kx, (B, inp, L), jnp.float32)

    raw = _make_raw_params(kp, cb)
    packed = fold_and_pack_params(*raw)

    out = jax.block_until_ready(inverted_residual_stride1(x, packed))
    ref = jax.block_until_ready(_reference(x, raw))

    np.testing.assert_allclose(np.asarray(out), np.asarray(ref),
                               rtol=1e-4, atol=1e-4)
    assert out.shape == (B, inp, L)
    print("KERNEL_OK")
</pallas_src>

<mosaic_0001>
module attributes {stable_mosaic.version = 11 : i64} {
  func.func @_inverted_residual_kernel(%arg0: i32, %arg1: memref<4x32x128xf32, #tpu.memory_space<vmem>>, %arg2: memref<16x32xf32, #tpu.memory_space<vmem>>, %arg3: memref<16x6xf32, #tpu.memory_space<vmem>>, %arg4: memref<4x16x256xf32, #tpu.memory_space<vmem>>) attributes {dimension_semantics = [#tpu.dimension_semantics<parallel>], iteration_bounds = array<i64: 2>, scalar_prefetch = 0 : i64, scratch_operands = 0 : i64, tpu.core_type = #tpu.core_type<tc>, window_params = [{transform_indices = @transform_0, window_bounds = array<i64: 4, 32, 128>}, {pipeline_mode = #tpu.pipeline_mode<synchronous>, transform_indices = @transform_1, window_bounds = array<i64: 16, 32>}, {pipeline_mode = #tpu.pipeline_mode<synchronous>, transform_indices = @transform_2, window_bounds = array<i64: 16, 6>}, {transform_indices = @transform_3, window_bounds = array<i64: 4, 16, 256>}]} {
    %c0 = arith.constant 0 : index
    %c0_0 = arith.constant 0 : index
    %0 = vector.load %arg2[%c0, %c0_0] : memref<16x32xf32, #tpu.memory_space<vmem>>, vector<16x16xf32>
    %c0_1 = arith.constant 0 : index
    %c16 = arith.constant 16 : index
    %1 = vector.load %arg2[%c0_1, %c16] : memref<16x32xf32, #tpu.memory_space<vmem>>, vector<16x16xf32>
    %c0_2 = arith.constant 0 : index
    %c0_3 = arith.constant 0 : index
    %2 = vector.load %arg3[%c0_2, %c0_3] : memref<16x6xf32, #tpu.memory_space<vmem>>, vector<16x1xf32>
    %c0_4 = arith.constant 0 : index
    %c1 = arith.constant 1 : index
    %3 = vector.load %arg3[%c0_4, %c1] : memref<16x6xf32, #tpu.memory_space<vmem>>, vector<16x1xf32>
    %c0_5 = arith.constant 0 : index
    %c2 = arith.constant 2 : index
    %4 = vector.load %arg3[%c0_5, %c2] : memref<16x6xf32, #tpu.memory_space<vmem>>, vector<16x1xf32>
    %c0_6 = arith.constant 0 : index
    %c3 = arith.constant 3 : index
    %5 = vector.load %arg3[%c0_6, %c3] : memref<16x6xf32, #tpu.memory_space<vmem>>, vector<16x1xf32>
    %c0_7 = arith.constant 0 : index
    %c4 = arith.constant 4 : index
    %6 = vector.load %arg3[%c0_7, %c4] : memref<16x6xf32, #tpu.memory_space<vmem>>, vector<16x1xf32>
    %c0_8 = arith.constant 0 : index
    %c5 = arith.constant 5 : index
    %7 = vector.load %arg3[%c0_8, %c5] : memref<16x6xf32, #tpu.memory_space<vmem>>, vector<16x1xf32>
    %8 = tpu.iota {dimensions = array<i32: 1>} : vector<16x128xi32>
    %c0_i32 = arith.constant 0 : i32
    %9 = vector.broadcast %c0_i32 : i32 to vector<16x128xi32>
    %10 = arith.cmpi ne, %8, %9 : vector<16x128xi32>
    %c127_i32 = arith.constant 127 : i32
    %11 = vector.broadcast %c127_i32 : i32 to vector<16x128xi32>
    %12 = arith.cmpi ne, %8, %11 : vector<16x128xi32>
    %cst = arith.constant 0.000000e+00 : f32
    %13 = vector.broadcast %cst : f32 to vector<16x128xf32>
    %c0_9 = arith.constant 0 : index
    %c0_10 = arith.constant 0 : index
    %c0_11 = arith.constant 0 : index
    %14 = vector.load %arg1[%c0_9, %c0_10, %c0_11] : memref<4x32x128xf32, #tpu.memory_space<vmem>>, vector<1x16x128xf32>
    %15 = vector.shape_cast %14 : vector<1x16x128xf32> to vector<16x128xf32>
    %c0_12 = arith.constant 0 : index
    %c16_13 = arith.constant 16 : index
    %c0_14 = arith.constant 0 : index
    %16 = vector.load %arg1[%c0_12, %c16_13, %c0_14] : memref<4x32x128xf32, #tpu.memory_space<vmem>>, vector<1x16x128xf32>
    %17 = vector.shape_cast %16 : vector<1x16x128xf32> to vector<16x128xf32>
    %cst_15 = arith.constant dense<0.000000e+00> : vector<16x128xf32>
    %18 = tpu.matmul %0, %17, %cst_15 {dimension_numbers = #tpu.dot_dimension_numbers<[1], [0], [0], [1], [0, 0, 1, 1], [], []>} : vector<16x16xf32>, vector<16x128xf32>, vector<16x128xf32> -> vector<16x128xf32>
    %19 = vector.broadcast %5 : vector<16x1xf32> to vector<16x128xf32>
    %20 = arith.addf %18, %19 : vector<16x128xf32>
    %cst_16 = arith.constant 0.000000e+00 : f32
    %21 = vector.broadcast %cst_16 : f32 to vector<16x128xf32>
    %22 = arith.maximumf %20, %21 : vector<16x128xf32>
    %23 = vector.extract_strided_slice %22 {offsets = [0, 127], sizes = [16, 1], strides = [1, 1]} : vector<16x128xf32> to vector<16x1xf32>
    %24 = vector.extract_strided_slice %22 {offsets = [0, 0], sizes = [16, 127], strides = [1, 1]} : vector<16x128xf32> to vector<16x127xf32>
    %25 = tpu.concatenate %23, %24 in 1 : vector<16x1xf32>, vector<16x127xf32> -> vector<16x128xf32>
    %26 = arith.select %10, %25, %13 : vector<16x128xi1>, vector<16x128xf32>
    %27 = vector.extract_strided_slice %22 {offsets = [0, 1], sizes = [16, 127], strides = [1, 1]} : vector<16x128xf32> to vector<16x127xf32>
    %28 = vector.extract_strided_slice %22 {offsets = [0, 0], sizes = [16, 1], strides = [1, 1]} : vector<16x128xf32> to vector<16x1xf32>
    %29 = tpu.concatenate %27, %28 in 1 : vector<16x127xf32>, vector<16x1xf32> -> vector<16x128xf32>
    %30 = arith.select %12, %29, %13 : vector<16x128xi1>, vector<16x128xf32>
    %31 = vector.broadcast %2 : vector<16x1xf32> to vector<16x128xf32>
    %32 = arith.mulf %31, %26 : vector<16x128xf32>
    %33 = vector.broadcast %3 : vector<16x1xf32> to vector<16x128xf32>
    %34 = arith.mulf %33, %22 : vector<16x128xf32>
    %35 = arith.addf %32, %34 : vector<16x128xf32>
    %36 = vector.broadcast %4 : vector<16x1xf32> to vector<16x128xf32>
    %37 = arith.mulf %36, %30 : vector<16x128xf32>
    %38 = arith.addf %35, %37 : vector<16x128xf32>
    %39 = vector.broadcast %6 : vector<16x1xf32> to vector<16x128xf32>
    %40 = arith.addf %38, %39 : vector<16x128xf32>
    %cst_17 = arith.constant dense<0.000000e+00> : vector<16x128xf32>
    %41 = tpu.matmul %1, %40, %cst_17 {dimension_numbers = #tpu.dot_dimension_numbers<[1], [0], [0], [1], [0, 0, 1, 1], [], []>} : vector<16x16xf32>, vector<16x128xf32>, vector<16x128xf32> -> vector<16x128xf32>
    %42 = vector.broadcast %7 : vector<16x1xf32> to vector<16x128xf32>
    %43 = arith.addf %41, %42 : vector<16x128xf32>
    %cst_18 = arith.constant 0.000000e+00 : f32
    %44 = vector.broadcast %cst_18 : f32 to vector<16x128xf32>
    %45 = arith.maximumf %43, %44 : vector<16x128xf32>
    %c0_19 = arith.constant 0 : index
    %c0_20 = arith.constant 0 : index
    %c0_21 = arith.constant 0 : index
    %46 = vector.load %arg4[%c0_19, %c0_20, %c0_21] : memref<4x16x256xf32, #tpu.memory_space<vmem>>, vector<1x16x128xf32>
    %47 = vector.shape_cast %46 : vector<1x16x128xf32> to vector<16x128xf32>
    %48 = vector.shape_cast %15 : vector<16x128xf32> to vector<1x16x128xf32>
    tpu.vector_store %arg4[%c0_19, %c0_20, %c0_21], %48 {strides = array<i32>} : memref<4x16x256xf32, #tpu.memory_space<vmem>>, vector<1x16x128xf32>,
    %c0_22 = arith.constant 0 : index
    %c0_23 = arith.constant 0 : index
    %c128 = arith.constant 128 : index
    %49 = vector.load %arg4[%c0_22, %c0_23, %c128] : memref<4x16x256xf32, #tpu.memory_space<vmem>>, vector<1x16x128xf32>
    %50 = vector.shape_cast %49 : vector<1x16x128xf32> to vector<16x128xf32>
    %51 = vector.shape_cast %45 : vector<16x128xf32> to vector<1x16x128xf32>
    tpu.vector_store %arg4[%c0_22, %c0_23, %c128], %51 {strides = array<i32>} : memref<4x16x256xf32, #tpu.memory_space<vmem>>, vector<1x16x128xf32>,
    %c1_24 = arith.constant 1 : index
    %c0_25 = arith.constant 0 : index
    %c0_26 = arith.constant 0 : index
    %52 = vector.load %arg1[%c1_24, %c0_25, %c0_26] : memref<4x32x128xf32, #tpu.memory_space<vmem>>, vector<1x16x128xf32>
    %53 = vector.shape_cast %52 : vector<1x16x128xf32> to vector<16x128xf32>
    %c1_27 = arith.constant 1 : index
    %c16_28 = arith.constant 16 : index
    %c0_29 = arith.constant 0 : index
    %54 = vector.load %arg1[%c1_27, %c16_28, %c0_29] : memref<4x32x128xf32, #tpu.memory_space<vmem>>, vector<1x16x128xf32>
    %55 = vector.shape_cast %54 : vector<1x16x128xf32> to vector<16x128xf32>
    %cst_30 = arith.constant dense<0.000000e+00> : vector<16x128xf32>
    %56 = tpu.matmul %0, %55, %cst_30 {dimension_numbers = #tpu.dot_dimension_numbers<[1], [0], [0], [1], [0, 0, 1, 1], [], []>} : vector<16x16xf32>, vector<16x128xf32>, vector<16x128xf32> -> vector<16x128xf32>
    %57 = vector.broadcast %5 : vector<16x1xf32> to vector<16x128xf32>
    %58 = arith.addf %56, %57 : vector<16x128xf32>
    %cst_31 = arith.constant 0.000000e+00 : f32
    %59 = vector.broadcast %cst_31 : f32 to vector<16x128xf32>
    %60 = arith.maximumf %58, %59 : vector<16x128xf32>
    %61 = vector.extract_strided_slice %60 {offsets = [0, 127], sizes = [16, 1], strides = [1, 1]} : vector<16x128xf32> to vector<16x1xf32>
    %62 = vector.extract_strided_slice %60 {offsets = [0, 0], sizes = [16, 127], strides = [1, 1]} : vector<16x128xf32> to vector<16x127xf32>
    %63 = tpu.concatenate %61, %62 in 1 : vector<16x1xf32>, vector<16x127xf32> -> vector<16x128xf32>
    %64 = arith.select %10, %63, %13 : vector<16x128xi1>, vector<16x128xf32>
    %65 = vector.extract_strided_slice %60 {offsets = [0, 1], sizes = [16, 127], strides = [1, 1]} : vector<16x128xf32> to vector<16x127xf32>
    %66 = vector.extract_strided_slice %60 {offsets = [0, 0], sizes = [16, 1], strides = [1, 1]} : vector<16x128xf32> to vector<16x1xf32>
    %67 = tpu.concatenate %65, %66 in 1 : vector<16x127xf32>, vector<16x1xf32> -> vector<16x128xf32>
    %68 = arith.select %12, %67, %13 : vector<16x128xi1>, vector<16x128xf32>
    %69 = vector.broadcast %2 : vector<16x1xf32> to vector<16x128xf32>
    %70 = arith.mulf %69, %64 : vector<16x128xf32>
    %71 = vector.broadcast %3 : vector<16x1xf32> to vector<16x128xf32>
    %72 = arith.mulf %71, %60 : vector<16x128xf32>
    %73 = arith.addf %70, %72 : vector<16x128xf32>
    %74 = vector.broadcast %4 : vector<16x1xf32> to vector<16x128xf32>
    %75 = arith.mulf %74, %68 : vector<16x128xf32>
    %76 = arith.addf %73, %75 : vector<16x128xf32>
    %77 = vector.broadcast %6 : vector<16x1xf32> to vector<16x128xf32>
    %78 = arith.addf %76, %77 : vector<16x128xf32>
    %cst_32 = arith.constant dense<0.000000e+00> : vector<16x128xf32>
    %79 = tpu.matmul %1, %78, %cst_32 {dimension_numbers = #tpu.dot_dimension_numbers<[1], [0], [0], [1], [0, 0, 1, 1], [], []>} : vector<16x16xf32>, vector<16x128xf32>, vector<16x128xf32> -> vector<16x128xf32>
    %80 = vector.broadcast %7 : vector<16x1xf32> to vector<16x128xf32>
    %81 = arith.addf %79, %80 : vector<16x128xf32>
    %cst_33 = arith.constant 0.000000e+00 : f32
    %82 = vector.broadcast %cst_33 : f32 to vector<16x128xf32>
    %83 = arith.maximumf %81, %82 : vector<16x128xf32>
    %c1_34 = arith.constant 1 : index
    %c0_35 = arith.constant 0 : index
    %c0_36 = arith.constant 0 : index
    %84 = vector.load %arg4[%c1_34, %c0_35, %c0_36] : memref<4x16x256xf32, #tpu.memory_space<vmem>>, vector<1x16x128xf32>
    %85 = vector.shape_cast %84 : vector<1x16x128xf32> to vector<16x128xf32>
    %86 = vector.shape_cast %53 : vector<16x128xf32> to vector<1x16x128xf32>
    tpu.vector_store %arg4[%c1_34, %c0_35, %c0_36], %86 {strides = array<i32>} : memref<4x16x256xf32, #tpu.memory_space<vmem>>, vector<1x16x128xf32>,
    %c1_37 = arith.constant 1 : index
    %c0_38 = arith.constant 0 : index
    %c128_39 = arith.constant 128 : index
    %87 = vector.load %arg4[%c1_37, %c0_38, %c128_39] : memref<4x16x256xf32, #tpu.memory_space<vmem>>, vector<1x16x128xf32>
    %88 = vector.shape_cast %87 : vector<1x16x128xf32> to vector<16x128xf32>
    %89 = vector.shape_cast %83 : vector<16x128xf32> to vector<1x16x128xf32>
    tpu.vector_store %arg4[%c1_37, %c0_38, %c128_39], %89 {strides = array<i32>} : memref<4x16x256xf32, #tpu.memory_space<vmem>>, vector<1x16x128xf32>,
    %c2_40 = arith.constant 2 : index
    %c0_41 = arith.constant 0 : index
    %c0_42 = arith.constant 0 : index
    %90 = vector.load %arg1[%c2_40, %c0_41, %c0_42] : memref<4x32x128xf32, #tpu.memory_space<vmem>>, vector<1x16x128xf32>
    %91 = vector.shape_cast %90 : vector<1x16x128xf32> to vector<16x128xf32>
    %c2_43 = arith.constant 2 : index
    %c16_44 = arith.constant 16 : index
    %c0_45 = arith.constant 0 : index
    %92 = vector.load %arg1[%c2_43, %c16_44, %c0_45] : memref<4x32x128xf32, #tpu.memory_space<vmem>>, vector<1x16x128xf32>
    %93 = vector.shape_cast %92 : vector<1x16x128xf32> to vector<16x128xf32>
    %cst_46 = arith.constant dense<0.000000e+00> : vector<16x128xf32>
    %94 = tpu.matmul %0, %93, %cst_46 {dimension_numbers = #tpu.dot_dimension_numbers<[1], [0], [0], [1], [0, 0, 1, 1], [], []>} : vector<16x16xf32>, vector<16x128xf32>, vector<16x128xf32> -> vector<16x128xf32>
    %95 = vector.broadcast %5 : vector<16x1xf32> to vector<16x128xf32>
    %96 = arith.addf %94, %95 : vector<16x128xf32>
    %cst_47 = arith.constant 0.000000e+00 : f32
    %97 = vector.broadcast %cst_47 : f32 to vector<16x128xf32>
    %98 = arith.maximumf %96, %97 : vector<16x128xf32>
    %99 = vector.extract_strided_slice %98 {offsets = [0, 127], sizes = [16, 1], strides = [1, 1]} : vector<16x128xf32> to vector<16x1xf32>
    %100 = vector.extract_strided_slice %98 {offsets = [0, 0], sizes = [16, 127], strides = [1, 1]} : vector<16x128xf32> to vector<16x127xf32>
    %101 = tpu.concatenate %99, %100 in 1 : vector<16x1xf32>, vector<16x127xf32> -> vector<16x128xf32>
    %102 = arith.select %10, %101, %13 : vector<16x128xi1>, vector<16x128xf32>
    %103 = vector.extract_strided_slice %98 {offsets = [0, 1], sizes = [16, 127], strides = [1, 1]} : vector<16x128xf32> to vector<16x127xf32>
    %104 = vector.extract_strided_slice %98 {offsets = [0, 0], sizes = [16, 1], strides = [1, 1]} : vector<16x128xf32> to vector<16x1xf32>
    %105 = tpu.concatenate %103, %104 in 1 : vector<16x127xf32>, vector<16x1xf32> -> vector<16x128xf32>
    %106 = arith.select %12, %105, %13 : vector<16x128xi1>, vector<16x128xf32>
    %107 = vector.broadcast %2 : vector<16x1xf32> to vector<16x128xf32>
    %108 = arith.mulf %107, %102 : vector<16x128xf32>
    %109 = vector.broadcast %3 : vector<16x1xf32> to vector<16x128xf32>
    %110 = arith.mulf %109, %98 : vector<16x128xf32>
    %111 = arith.addf %108, %110 : vector<16x128xf32>
    %112 = vector.broadcast %4 : vector<16x1xf32> to vector<16x128xf32>
    %113 = arith.mulf %112, %106 : vector<16x128xf32>
    %114 = arith.addf %111, %113 : vector<16x128xf32>
    %115 = vector.broadcast %6 : vector<16x1xf32> to vector<16x128xf32>
    %116 = arith.addf %114, %115 : vector<16x128xf32>
    %cst_48 = arith.constant dense<0.000000e+00> : vector<16x128xf32>
    %117 = tpu.matmul %1, %116, %cst_48 {dimension_numbers = #tpu.dot_dimension_numbers<[1], [0], [0], [1], [0, 0, 1, 1], [], []>} : vector<16x16xf32>, vector<16x128xf32>, vector<16x128xf32> -> vector<16x128xf32>
    %118 = vector.broadcast %7 : vector<16x1xf32> to vector<16x128xf32>
    %119 = arith.addf %117, %118 : vector<16x128xf32>
    %cst_49 = arith.constant 0.000000e+00 : f32
    %120 = vector.broadcast %cst_49 : f32 to vector<16x128xf32>
    %121 = arith.maximumf %119, %120 : vector<16x128xf32>
    %c2_50 = arith.constant 2 : index
    %c0_51 = arith.constant 0 : index
    %c0_52 = arith.constant 0 : index
    %122 = vector.load %arg4[%c2_50, %c0_51, %c0_52] : memref<4x16x256xf32, #tpu.memory_space<vmem>>, vector<1x16x128xf32>
    %123 = vector.shape_cast %122 : vector<1x16x128xf32> to vector<16x128xf32>
    %124 = vector.shape_cast %91 : vector<16x128xf32> to vector<1x16x128xf32>
    tpu.vector_store %arg4[%c2_50, %c0_51, %c0_52], %124 {strides = array<i32>} : memref<4x16x256xf32, #tpu.memory_space<vmem>>, vector<1x16x128xf32>,
    %c2_53 = arith.constant 2 : index
    %c0_54 = arith.constant 0 : index
    %c128_55 = arith.constant 128 : index
    %125 = vector.load %arg4[%c2_53, %c0_54, %c128_55] : memref<4x16x256xf32, #tpu.memory_space<vmem>>, vector<1x16x128xf32>
    %126 = vector.shape_cast %125 : vector<1x16x128xf32> to vector<16x128xf32>
    %127 = vector.shape_cast %121 : vector<16x128xf32> to vector<1x16x128xf32>
    tpu.vector_store %arg4[%c2_53, %c0_54, %c128_55], %127 {strides = array<i32>} : memref<4x16x256xf32, #tpu.memory_space<vmem>>, vector<1x16x128xf32>,
    %c3_56 = arith.constant 3 : index
    %c0_57 = arith.constant 0 : index
    %c0_58 = arith.constant 0 : index
    %128 = vector.load %arg1[%c3_56, %c0_57, %c0_58] : memref<4x32x128xf32, #tpu.memory_space<vmem>>, vector<1x16x128xf32>
    %129 = vector.shape_cast %128 : vector<1x16x128xf32> to vector<16x128xf32>
    %c3_59 = arith.constant 3 : index
    %c16_60 = arith.constant 16 : index
    %c0_61 = arith.constant 0 : index
    %130 = vector.load %arg1[%c3_59, %c16_60, %c0_61] : memref<4x32x128xf32, #tpu.memory_space<vmem>>, vector<1x16x128xf32>
    %131 = vector.shape_cast %130 : vector<1x16x128xf32> to vector<16x128xf32>
    %cst_62 = arith.constant dense<0.000000e+00> : vector<16x128xf32>
    %132 = tpu.matmul %0, %131, %cst_62 {dimension_numbers = #tpu.dot_dimension_numbers<[1], [0], [0], [1], [0, 0, 1, 1], [], []>} : vector<16x16xf32>, vector<16x128xf32>, vector<16x128xf32> -> vector<16x128xf32>
    %133 = vector.broadcast %5 : vector<16x1xf32> to vector<16x128xf32>
    %134 = arith.addf %132, %133 : vector<16x128xf32>
    %cst_63 = arith.constant 0.000000e+00 : f32
    %135 = vector.broadcast %cst_63 : f32 to vector<16x128xf32>
    %136 = arith.maximumf %134, %135 : vector<16x128xf32>
    %137 = vector.extract_strided_slice %136 {offsets = [0, 127], sizes = [16, 1], strides = [1, 1]} : vector<16x128xf32> to vector<16x1xf32>
    %138 = vector.extract_strided_slice %136 {offsets = [0, 0], sizes = [16, 127], strides = [1, 1]} : vector<16x128xf32> to vector<16x127xf32>
    %139 = tpu.concatenate %137, %138 in 1 : vector<16x1xf32>, vector<16x127xf32> -> vector<16x128xf32>
    %140 = arith.select %10, %139, %13 : vector<16x128xi1>, vector<16x128xf32>
    %141 = vector.extract_strided_slice %136 {offsets = [0, 1], sizes = [16, 127], strides = [1, 1]} : vector<16x128xf32> to vector<16x127xf32>
    %142 = vector.extract_strided_slice %136 {offsets = [0, 0], sizes = [16, 1], strides = [1, 1]} : vector<16x128xf32> to vector<16x1xf32>
    %143 = tpu.concatenate %141, %142 in 1 : vector<16x127xf32>, vector<16x1xf32> -> vector<16x128xf32>
    %144 = arith.select %12, %143, %13 : vector<16x128xi1>, vector<16x128xf32>
    %145 = vector.broadcast %2 : vector<16x1xf32> to vector<16x128xf32>
    %146 = arith.mulf %145, %140 : vector<16x128xf32>
    %147 = vector.broadcast %3 : vector<16x1xf32> to vector<16x128xf32>
    %148 = arith.mulf %147, %136 : vector<16x128xf32>
    %149 = arith.addf %146, %148 : vector<16x128xf32>
    %150 = vector.broadcast %4 : vector<16x1xf32> to vector<16x128xf32>
    %151 = arith.mulf %150, %144 : vector<16x128xf32>
    %152 = arith.addf %149, %151 : vector<16x128xf32>
    %153 = vector.broadcast %6 : vector<16x1xf32> to vector<16x128xf32>
    %154 = arith.addf %152, %153 : vector<16x128xf32>
    %cst_64 = arith.constant dense<0.000000e+00> : vector<16x128xf32>
    %155 = tpu.matmul %1, %154, %cst_64 {dimension_numbers = #tpu.dot_dimension_numbers<[1], [0], [0], [1], [0, 0, 1, 1], [], []>} : vector<16x16xf32>, vector<16x128xf32>, vector<16x128xf32> -> vector<16x128xf32>
    %156 = vector.broadcast %7 : vector<16x1xf32> to vector<16x128xf32>
    %157 = arith.addf %155, %156 : vector<16x128xf32>
    %cst_65 = arith.constant 0.000000e+00 : f32
    %158 = vector.broadcast %cst_65 : f32 to vector<16x128xf32>
    %159 = arith.maximumf %157, %158 : vector<16x128xf32>
    %c3_66 = arith.constant 3 : index
    %c0_67 = arith.constant 0 : index
    %c0_68 = arith.constant 0 : index
    %160 = vector.load %arg4[%c3_66, %c0_67, %c0_68] : memref<4x16x256xf32, #tpu.memory_space<vmem>>, vector<1x16x128xf32>
    %161 = vector.shape_cast %160 : vector<1x16x128xf32> to vector<16x128xf32>
    %162 = vector.shape_cast %129 : vector<16x128xf32> to vector<1x16x128xf32>
    tpu.vector_store %arg4[%c3_66, %c0_67, %c0_68], %162 {strides = array<i32>} : memref<4x16x256xf32, #tpu.memory_space<vmem>>, vector<1x16x128xf32>,
    %c3_69 = arith.constant 3 : index
    %c0_70 = arith.constant 0 : index
    %c128_71 = arith.constant 128 : index
    %163 = vector.load %arg4[%c3_69, %c0_70, %c128_71] : memref<4x16x256xf32, #tpu.memory_space<vmem>>, vector<1x16x128xf32>
    %164 = vector.shape_cast %163 : vector<1x16x128xf32> to vector<16x128xf32>
    %165 = vector.shape_cast %159 : vector<16x128xf32> to vector<1x16x128xf32>
    tpu.vector_store %arg4[%c3_69, %c0_70, %c128_71], %165 {strides = array<i32>} : memref<4x16x256xf32, #tpu.memory_space<vmem>>, vector<1x16x128xf32>,
    return
  }
  func.func @transform_0(%arg0: i32) -> (i32, i32, i32) {
    %c0_i32 = arith.constant 0 : i32
    %c0_i32_0 = arith.constant 0 : i32
    %c0_i32_1 = arith.constant 0 : i32
    return %arg0, %c0_i32, %c0_i32_0 : i32, i32, i32
  }
  func.func @transform_1(%arg0: i32) -> (i32, i32) {
    %c0_i32 = arith.constant 0 : i32
    %c0_i32_0 = arith.constant 0 : i32
    %c0_i32_1 = arith.constant 0 : i32
    return %c0_i32, %c0_i32_0 : i32, i32
  }
  func.func @transform_2(%arg0: i32) -> (i32, i32) {
    %c0_i32 = arith.constant 0 : i32
    %c0_i32_0 = arith.constant 0 : i32
    %c0_i32_1 = arith.constant 0 : i32
    return %c0_i32, %c0_i32_0 : i32, i32
  }
  func.func @transform_3(%arg0: i32) -> (i32, i32, i32) {
    %c0_i32 = arith.constant 0 : i32
    %c0_i32_0 = arith.constant 0 : i32
    %c0_i32_1 = arith.constant 0 : i32
    return %arg0, %c0_i32, %c0_i32_0 : i32, i32, i32
  }
}

</mosaic_0001>

<llo_original>
// kernel: tpu_custom_call.1
$region0: #{tpu_custom_call.1}
  #allocation0 [shape = 'u32[]', space=smem, size = 0x4, offset = 0x4, fixed_abs, tag = 'smem constant byte address 0x4 - core index']
  #allocation1 [shape = 'u32[72,128]{1,0:T(1,128)}', space=vmem, size = 0x9000, scoped, tag = 'internal scratch']
  %s0 = inlined_call_operand.hbm [shape: f32[8,32,128], index: 0, kind: input, shape index: {}]
  %s1 = inlined_call_operand.vmem [shape: f32[16,32], index: 1, kind: input, shape index: {}]
  %s2 = inlined_call_operand.vmem [shape: f32[16,6], index: 2, kind: input, shape index: {}]
  %s3 = inlined_call_operand.hbm [shape: f32[8,16,256], index: 3, kind: output, shape index: {}]
  %s4 = sld [smem:[#allocation0]]
  $region49: #{tpu_custom_call.1} parent=0
    _
  %s6 = ssub.s32 1, %s4
  %s7 = scalar_select 0, %s6, %s4
  $region1: #{tpu_custom_call.1} parent=0
    #allocation2 [shape = 'u8[131072]{0}', space=vmem, size = 0x20000, scoped, tag = 'input window, operand 0']
    #allocation3 [shape = 's32[2]{0}', space=sflag, size = 0x8, scoped, tag = 'scoped memory for tpu_custom_call.1']
    #allocation4 [shape = 's32[2]{0}', space=sflag, size = 0x8, scoped, tag = 'scoped memory for tpu_custom_call.1']
    #allocation5 [shape = 'u8[131072]{0}', space=vmem, size = 0x20000, scoped, tag = 'output window, operand 0']
    %8 = vsyncpa [#allocation3], 0
    %s9 = scalar_lea.sflag [#allocation3], 1
    %10 = vsyncpa %s9, 0
    %11 = vsyncpa [#allocation4], 0
    %s12 = scalar_lea.sflag [#allocation4], 1
    %13 = vsyncpa %s12, 0
    loop: start=0, step=1, limit=4
    $region2: #{tpu_custom_call.1} parent=1 // loop_pre_header
      _
    $region3: #{tpu_custom_call.1} parent=1 // loop_header
      %s15 = sphi 0, %s19
      %p16 = scmp.ge.s32.totalorder %s15, 4
      %s25 = sphi 0, %s27
      %s28 = sphi 0, %s25
      %s29 = sphi 0, %s28
      %s45 = sphi 0, %s29
      %s49 = sphi 0, %s49
      %s51 = sphi 0, %s49
      %s52 = sphi 0, %s51
      %s66 = sphi 0, %s52
      %s70 = sphi 0, %s70
      %s72 = sphi 0, %s70
      %s73 = sphi 0, %s72
      %s87 = sphi 0, %s73
      %s93 = sphi 0, %s95
      %s96 = sphi 0, %s93
      %s97 = sphi 0, %s96
      %s113 = sphi 0, %s97
    $region4: #{tpu_custom_call.1} parent=1 // loop_header_branch
      %18 = sbr.rel (%p16) target = $region8
    $region5: #{tpu_custom_call.1} parent=1 // loop_body
      %s20 = ssub.s32 %s15, 1
      %s21 = ssub.s32 %s15, 2
      %s22 = sadd.s32 %s15, 1
      %s23 = ssub.s32 %s15, %s22
      %p24 = scmp.eq.s32.totalorder %s23, 0
      %s26 = sadd.s32 %s25, 1
      %s27 = scalar_select %p24, %s25, %s26
      %p30 = pneg %p24
      %p31 = scmp.eq.s32.totalorder %s15, 1
      %p32 = por %p30, %p31
      %p33 = scmp.ne.s32.totalorder %s25, %s28
      %p34 = scmp.eq.s32.totalorder %s15, 0
      %p35 = por %p33, %p34
      %p36 = scmp.ne.s32.totalorder %s25, %s28
      %p37 = scmp.eq.s32.totalorder %s20, 1
      %p38 = por %p36, %p37
      %p39 = scmp.ne.s32.totalorder %s28, %s29
      %p40 = scmp.eq.s32.totalorder %s20, 0
      %p41 = por %p39, %p40
      %p42 = scmp.ne.s32.totalorder %s28, %s29
      %p43 = scmp.eq.s32.totalorder %s21, 1
      %p44 = por %p42, %p43
      %p46 = scmp.ne.s32.totalorder %s29, %s45
      %p47 = scmp.eq.s32.totalorder %s21, 0
      %p48 = por %p46, %p47
      %s50 = sadd.s32 %s49, 1
      %p53 = scmp.eq.s32.totalorder %s15, 1
      %p54 = scmp.ne.s32.totalorder %s49, %s51
      %p55 = scmp.eq.s32.totalorder %s15, 0
      %p56 = por %p54, %p55
      %p57 = scmp.ne.s32.totalorder %s49, %s51
      %p58 = scmp.eq.s32.totalorder %s20, 1
      %p59 = por %p57, %p58
      %p60 = scmp.ne.s32.totalorder %s51, %s52
      %p61 = scmp.eq.s32.totalorder %s20, 0
      %p62 = por %p60, %p61
      %p63 = scmp.ne.s32.totalorder %s51, %s52
      %p64 = scmp.eq.s32.totalorder %s21, 1
      %p65 = por %p63, %p64
      %p67 = scmp.ne.s32.totalorder %s52, %s66
      %p68 = scmp.eq.s32.totalorder %s21, 0
      %p69 = por %p67, %p68
      %s71 = sadd.s32 %s70, 1
      %p74 = scmp.eq.s32.totalorder %s15, 1
      %p75 = scmp.ne.s32.totalorder %s70, %s72
      %p76 = scmp.eq.s32.totalorder %s15, 0
      %p77 = por %p75, %p76
      %p78 = scmp.ne.s32.totalorder %s70, %s72
      %p79 = scmp.eq.s32.totalorder %s20, 1
      %p80 = por %p78, %p79
      %p81 = scmp.ne.s32.totalorder %s72, %s73
      %p82 = scmp.eq.s32.totalorder %s20, 0
      %p83 = por %p81, %p82
      %p84 = scmp.ne.s32.totalorder %s72, %s73
      %p85 = scmp.eq.s32.totalorder %s21, 1
      %p86 = por %p84, %p85
      %p88 = scmp.ne.s32.totalorder %s73, %s87
      %p89 = scmp.eq.s32.totalorder %s21, 0
      %p90 = por %p88, %p89
      %s91 = ssub.s32 %s15, %s22
      %p92 = scmp.eq.s32.totalorder %s91, 0
      %s94 = sadd.s32 %s93, 1
      %s95 = scalar_select %p92, %s93, %s94
      %p98 = pneg %p92
      %p99 = scmp.eq.s32.totalorder %s15, 1
      %p100 = por %p98, %p99
      %p101 = scmp.ne.s32.totalorder %s93, %s96
      %p102 = scmp.eq.s32.totalorder %s15, 0
      %p103 = por %p101, %p102
      %p104 = scmp.ne.s32.totalorder %s93, %s96
      %p105 = scmp.eq.s32.totalorder %s20, 1
      %p106 = por %p104, %p105
      %p107 = scmp.ne.s32.totalorder %s96, %s97
      %p108 = scmp.eq.s32.totalorder %s20, 0
      %p109 = por %p107, %p108
      %p110 = scmp.ne.s32.totalorder %s96, %s97
      %p111 = scmp.eq.s32.totalorder %s21, 1
      %p112 = por %p110, %p111
      %p114 = scmp.ne.s32.totalorder %s97, %s113
      %p115 = scmp.eq.s32.totalorder %s21, 0
      %p116 = por %p114, %p115
      %p117 = scmp.le.s32.totalorder 1, %s15
      %p118 = scmp.lt.s32.totalorder %s15, 3
      %p119 = pnand %p117, %p118
      %p120 = pneg %p119
      // Predicated region
      $region9: #{tpu_custom_call.1} parent=5 // pred_check
        _
      $region10: #{tpu_custom_call.1} parent=5 // pred_check_branch
        %122 = sbr.rel (%p119) target = $region12
      $region11: #{tpu_custom_call.1} parent=5 // pred_region
        %s123 = ssub.s32 %s15, 1
        // Predicated region
        $region13: #{tpu_custom_call.1} parent=11 // pred_check
          %p124 = pneg %p62
        $region14: #{tpu_custom_call.1} parent=11 // pred_check_branch
          %126 = sbr.rel (%p124) target = $region16
        $region15: #{tpu_custom_call.1} parent=11 // pred_region
          _
        $region16: #{tpu_custom_call.1} parent=11 // pred_fallthru
          _
        // Predicated region
        $region17: #{tpu_custom_call.1} parent=11 // pred_check
          %p127 = pneg %p83
        $region18: #{tpu_custom_call.1} parent=11 // pred_check_branch
          %129 = sbr.rel (%p127) target = $region20
        $region19: #{tpu_custom_call.1} parent=11 // pred_region
          _
        $region20: #{tpu_custom_call.1} parent=11 // pred_fallthru
          _
      $region12: #{tpu_custom_call.1} parent=5 // pred_fallthru
        _
      %p130 = scmp.lt.s32.totalorder %s15, 2
      // Predicated region
      $region21: #{tpu_custom_call.1} parent=5 // pred_check
        %p131 = pneg %p130
      $region22: #{tpu_custom_call.1} parent=5 // pred_check_branch
        %133 = sbr.rel (%p131) target = $region24
      $region23: #{tpu_custom_call.1} parent=5 // pred_region
        // Predicated region
        $region25: #{tpu_custom_call.1} parent=23 // pred_check
          %p134 = pneg %p35
        $region26: #{tpu_custom_call.1} parent=23 // pred_check_branch
          %136 = sbr.rel (%p134) target = $region28
        $region27: #{tpu_custom_call.1} parent=23 // pred_region
          %s137 = sand.u32 %s25, 1
          %s138 = scalar_lea.sflag [#allocation3], %s137
          %s139 = sand.u32 %s25, 1
          %s140 = smul.addr %s139, 128
          %s141 = scalar_lea.vmem [#allocation2], %s140
          %s142 = smul.u32 4, %s15
          %144 = vsyncadd %s138, 0
          %s145 = smul.addr %s142, 4
          %s146 = smul.addr %s145, 8
          %s147 = scalar_lea.hbm %s0, %s146
          %s148 = sshll.u32 %s147, 4
          %s149 = int_to_ptr.hbm [resolvable:$true] %s148
          %s150 = sshll.u32 %s141, 4
          %s151 = int_to_ptr.vmem [resolvable:$true] %s150
          %156 = dma.hbm_to_vmem [thread:$0]  %s149, 2048, %s151, %s138, 128, 128, 8
        $region28: #{tpu_custom_call.1} parent=23 // pred_fallthru
          _
      $region24: #{tpu_custom_call.1} parent=5 // pred_fallthru
        _
      %p157 = scmp.le.s32.totalorder 1, %s15
      %p158 = scmp.lt.s32.totalorder %s15, 3
      %p159 = pnand %p157, %p158
      %p160 = pneg %p159
      // Predicated region
      $region29: #{tpu_custom_call.1} parent=5 // pred_check
        _
      $region30: #{tpu_custom_call.1} parent=5 // pred_check_branch
        %162 = sbr.rel (%p159) target = $region32
      $region31: #{tpu_custom_call.1} parent=5 // pred_region
        %s163 = ssub.s32 %s15, 1
        %s164 = sand.u32 %s28, 1
        %s165 = scalar_lea.sflag [#allocation3], %s164
        %s166 = sand.u32 %s28, 1
        %s167 = smul.addr %s166, 128
        %s168 = scalar_lea.vmem [#allocation2], %s167
        // Predicated region
        $region33: #{tpu_custom_call.1} parent=31 // pred_check
          %p169 = pneg %p41
        $region34: #{tpu_custom_call.1} parent=31 // pred_check_branch
          %171 = sbr.rel (%p169) target = $region36
        $region35: #{tpu_custom_call.1} parent=31 // pred_region
          %173 = dma.done %s165, 2048
        $region36: #{tpu_custom_call.1} parent=31 // pred_fallthru
          _
        %s174 = sand.u32 %s28, 1
        %s175 = scalar_lea.sflag [#allocation3], %s174
        %s176 = sand.u32 %s28, 1
        %s177 = smul.addr %s176, 128
        %s178 = scalar_lea.vmem [#allocation2], %s177
        %p179 = pneg %p41
        %p180 = pneg %p38
        %p181 = pneg %p62
        %p182 = pneg %p59
        %p183 = pneg %p83
        %p184 = pneg %p80
        %p185 = pneg %p109
        %p186 = pneg %p106
        %s187 = sand.u32 %s96, 1
        %s188 = scalar_lea.sflag [#allocation4], %s187
        %s189 = sand.u32 %s96, 1
        %s190 = smul.addr %s189, 128
        %s191 = scalar_lea.vmem [#allocation5], %s190
        %s192 = smul.u32 4, %s20
        %s193 = smul.u32 4, %s20
        %v194 = vld [vmem:[%s1] sm:$0xff]
        %v195 = vld [vmem:[%s1 + $0x8] sm:$0xff]
        %v196 = vld [vmem:[%s2] sm:$0xff]
        %v197 = vld [vmem:[%s2 + $0x8] sm:$0xff]
        %v198 = vlaneseq
        %v199 = vand.u32 %v198, 127
        %vm200 = vcmp.ne.s32.totalorder %v199, 0
        %vm201 = vcmp.ne.s32.totalorder %v199, 127
        %v202 = vld [vmem:[%s168] sm:$0xff]
        %v203 = vld [vmem:[%s168 + $0x8] sm:$0xff]
        %v204 = vld [vmem:[%s168 + $0x10] sm:$0xff]
        %v205 = vld [vmem:[%s168 + $0x18] sm:$0xff]
        %207 = vset.pattern.permute.xlu0 3
        %208 = vperm.xlu0 %207, %v196
        %v209 = vpop.permute.xlu0 %208
        %212 = vset.pattern.permute.xlu0 3
        %213 = vperm.xlu0 %212, %v197
        %v214 = vpop.permute.xlu0 %213
        %vm216 = vcmask 130048
        %v218 = vsel %vm216, %v194, 0
        %v221 = vsel %vm216, %v195, 0
        %223 = vmatpush.msra.mxu0 0.0
        %224 = vmatpush.msra.mxu0 0.0
        %225 = vmatpush.msra.mxu0 0.0
        %226 = vmatpush.msra.mxu0 0.0
        %227 = vmatpush.msra.mxu0 0.0
        %228 = vmatpush.msra.mxu0 0.0
        %229 = vmatpush.msra.mxu0 0.0
        %230 = vmatpush.msra.mxu0 0.0
        %231 = vmatpush.msra.mxu0 0.0
        %232 = vmatpush.msra.mxu0 0.0
        %233 = vmatpush.msra.mxu0 0.0
        %234 = vmatpush.msra.mxu0 0.0
        %235 = vmatpush.msra.mxu0 0.0
        %236 = vmatpush.msra.mxu0 0.0
        %237 = vmatpush.msra.mxu0 %v205
        %238 = vmatpush.msra.mxu0 %v204
        %239 = vmatmul.f32.gmra.mxu0 %v218
        %v240 = vpop.f32.mrf.mxu0
        %v241 = vadd.f32 %v209, %v240
        %242 = vmatmul.f32.gmra.mxu0 %v221
        %v243 = vpop.f32.mrf.mxu0
        %v244 = vadd.f32 %v214, %v243
        %245 = vdwg.mxu0
        %v246 = vmax.f32 %v241, 0.0
        %v247 = vmax.f32 %v244, 0.0
        %250 = vrot.lane.b32.xlu0 %v246, 1
        %v251 = vpop.permute.xlu0 %250
        %252 = vrot.lane.b32.xlu0 %v247, 1
        %v253 = vpop.permute.xlu0 %252
        %v256 = vsel %vm200, %v251, 0.0
        %v257 = vsel %vm200, %v253, 0.0
        %258 = vrot.lane.b32.xlu0 %v246, 127
        %v259 = vpop.permute.xlu0 %258
        %260 = vrot.lane.b32.xlu0 %v247, 127
        %v261 = vpop.permute.xlu0 %260
        %v264 = vsel %vm201, %v259, 0.0
        %v265 = vsel %vm201, %v261, 0.0
        %266 = vset.pattern.permute.xlu0 0
        %267 = vperm.xlu0 %266, %v196
        %v268 = vpop.permute.xlu0 %267
        %270 = vset.pattern.permute.xlu0 0
        %271 = vperm.xlu0 %270, %v197
        %v272 = vpop.permute.xlu0 %271
        %v274 = vmul.f32 %v268, %v256
        %v275 = vmul.f32 %v272, %v257
        %276 = vset.pattern.permute.xlu0 1
        %277 = vperm.xlu0 %276, %v196
        %v278 = vpop.permute.xlu0 %277
        %280 = vset.pattern.permute.xlu0 1
        %281 = vperm.xlu0 %280, %v197
        %v282 = vpop.permute.xlu0 %281
        %v284 = vmul.f32 %v278, %v246
        %v285 = vmul.f32 %v282, %v247
        %v286 = vadd.f32 %v274, %v284
        %v287 = vadd.f32 %v275, %v285
        %288 = vset.pattern.permute.xlu0 2
        %289 = vperm.xlu0 %288, %v196
        %v290 = vpop.permute.xlu0 %289
        %292 = vset.pattern.permute.xlu0 2
        %293 = vperm.xlu0 %292, %v197
        %v294 = vpop.permute.xlu0 %293
        %v296 = vmul.f32 %v290, %v264
        %v297 = vmul.f32 %v294, %v265
        %v298 = vadd.f32 %v286, %v296
        %v299 = vadd.f32 %v287, %v297
        %300 = vset.pattern.permute.xlu0 4
        %301 = vperm.xlu0 %300, %v196
        %v302 = vpop.permute.xlu0 %301
        %304 = vset.pattern.permute.xlu0 4
        %305 = vperm.xlu0 %304, %v197
        %v306 = vpop.permute.xlu0 %305
        %v308 = vadd.f32 %v298, %v302
        %v309 = vadd.f32 %v299, %v306
        %310 = vset.pattern.permute.xlu0 5
        %311 = vperm.xlu0 %310, %v196
        %v312 = vpop.permute.xlu0 %311
        %314 = vset.pattern.permute.xlu0 5
        %315 = vperm.xlu0 %314, %v197
        %v316 = vpop.permute.xlu0 %315
        %318 = vrot.lane.b32.xlu0 %v194, 112
        %v319 = vpop.permute.xlu0 %318
        %320 = vrot.lane.b32.xlu0 %v195, 112
        %v321 = vpop.permute.xlu0 %320
        %v322 = vsel %vm216, %v319, 0
        %v324 = vsel %vm216, %v321, 0
        %326 = vmatpush.msra.mxu0 0.0
        %327 = vmatpush.msra.mxu0 0.0
        %328 = vmatpush.msra.mxu0 0.0
        %329 = vmatpush.msra.mxu0 0.0
        %330 = vmatpush.msra.mxu0 0.0
        %331 = vmatpush.msra.mxu0 0.0
        %332 = vmatpush.msra.mxu0 0.0
        %333 = vmatpush.msra.mxu0 0.0
        %334 = vmatpush.msra.mxu0 0.0
        %335 = vmatpush.msra.mxu0 0.0
        %336 = vmatpush.msra.mxu0 0.0
        %337 = vmatpush.msra.mxu0 0.0
        %338 = vmatpush.msra.mxu0 0.0
        %339 = vmatpush.msra.mxu0 0.0
        %340 = vmatpush.msra.mxu0 %v309
        %341 = vmatpush.msra.mxu0 %v308
        %342 = vmatmul.f32.gmra.mxu0 %v322
        %v343 = vpop.f32.mrf.mxu0
        %v344 = vadd.f32 %v312, %v343
        %345 = vmatmul.f32.gmra.mxu0 %v324
        %v346 = vpop.f32.mrf.mxu0
        %v347 = vadd.f32 %v316, %v346
        %348 = vdwg.mxu0
        %v349 = vmax.f32 %v344, 0.0
        %v350 = vmax.f32 %v347, 0.0
        %351 = vst [vmem:[%s191] sm:$0xff] %v202
        %352 = vst [vmem:[%s191 + $0x10] sm:$0xff] %v203
        %353 = vst [vmem:[%s191 + $0x8] sm:$0xff] %v349
        %354 = vst [vmem:[%s191 + $0x18] sm:$0xff] %v350
        %s355 = scalar_lea.vmem %s168, 32 [#allocation2]
        %v356 = vld [vmem:[%s355] sm:$0xff]
        %v357 = vld [vmem:[%s355 + $0x8] sm:$0xff]
        %v358 = vld [vmem:[%s355 + $0x10] sm:$0xff]
        %v359 = vld [vmem:[%s355 + $0x18] sm:$0xff]
        %360 = vmatpush.msra.mxu0 0.0
        %361 = vmatpush.msra.mxu0 0.0
        %362 = vmatpush.msra.mxu0 0.0
        %363 = vmatpush.msra.mxu0 0.0
        %364 = vmatpush.msra.mxu0 0.0
        %365 = vmatpush.msra.mxu0 0.0
        %366 = vmatpush.msra.mxu0 0.0
        %367 = vmatpush.msra.mxu0 0.0
        %368 = vmatpush.msra.mxu0 0.0
        %369 = vmatpush.msra.mxu0 0.0
        %370 = vmatpush.msra.mxu0 0.0
        %371 = vmatpush.msra.mxu0 0.0
        %372 = vmatpush.msra.mxu0 0.0
        %373 = vmatpush.msra.mxu0 0.0
        %374 = vmatpush.msra.mxu0 %v359
        %375 = vmatpush.msra.mxu0 %v358
        %376 = vmatmul.f32.gmra.mxu0 %v218
        %v377 = vpop.f32.mrf.mxu0
        %v378 = vadd.f32 %v209, %v377
        %379 = vmatmul.f32.gmra.mxu0 %v221
        %v380 = vpop.f32.mrf.mxu0
        %v381 = vadd.f32 %v214, %v380
        %382 = vdwg.mxu0
        %v383 = vmax.f32 %v378, 0.0
        %v384 = vmax.f32 %v381, 0.0
        %387 = vrot.lane.b32.xlu0 %v383, 1
        %v388 = vpop.permute.xlu0 %387
        %389 = vrot.lane.b32.xlu0 %v384, 1
        %v390 = vpop.permute.xlu0 %389
        %v393 = vsel %vm200, %v388, 0.0
        %v394 = vsel %vm200, %v390, 0.0
        %395 = vrot.lane.b32.xlu0 %v383, 127
        %v396 = vpop.permute.xlu0 %395
        %397 = vrot.lane.b32.xlu0 %v384, 127
        %v398 = vpop.permute.xlu0 %397
        %v401 = vsel %vm201, %v396, 0.0
        %v402 = vsel %vm201, %v398, 0.0
        %v403 = vmul.f32 %v268, %v393
        %v404 = vmul.f32 %v272, %v394
        %v405 = vmul.f32 %v278, %v383
        %v406 = vmul.f32 %v282, %v384
        %v407 = vadd.f32 %v403, %v405
        %v408 = vadd.f32 %v404, %v406
        %v409 = vmul.f32 %v290, %v401
        %v410 = vmul.f32 %v294, %v402
        %v411 = vadd.f32 %v407, %v409
        %v412 = vadd.f32 %v408, %v410
        %v413 = vadd.f32 %v411, %v302
        %v414 = vadd.f32 %v412, %v306
        %415 = vmatpush.msra.mxu0 0.0
        %416 = vmatpush.msra.mxu0 0.0
        %417 = vmatpush.msra.mxu0 0.0
        %418 = vmatpush.msra.mxu0 0.0
        %419 = vmatpush.msra.mxu0 0.0
        %420 = vmatpush.msra.mxu0 0.0
        %421 = vmatpush.msra.mxu0 0.0
        %422 = vmatpush.msra.mxu0 0.0
        %423 = vmatpush.msra.mxu0 0.0
        %424 = vmatpush.msra.mxu0 0.0
        %425 = vmatpush.msra.mxu0 0.0
        %426 = vmatpush.msra.mxu0 0.0
        %427 = vmatpush.msra.mxu0 0.0
        %428 = vmatpush.msra.mxu0 0.0
        %429 = vmatpush.msra.mxu0 %v414
        %430 = vmatpush.msra.mxu0 %v413
        %431 = vmatmul.f32.gmra.mxu0 %v322
        %v432 = vpop.f32.mrf.mxu0
        %v433 = vadd.f32 %v312, %v432
        %434 = vmatmul.f32.gmra.mxu0 %v324
        %v435 = vpop.f32.mrf.mxu0
        %v436 = vadd.f32 %v316, %v435
        %437 = vdwg.mxu0
        %v438 = vmax.f32 %v433, 0.0
        %v439 = vmax.f32 %v436, 0.0
        %s440 = scalar_lea.vmem %s191, 32 [#allocation5]
        %441 = vst [vmem:[%s440] sm:$0xff] %v356
        %442 = vst [vmem:[%s440 + $0x10] sm:$0xff] %v357
        %443 = vst [vmem:[%s440 + $0x8] sm:$0xff] %v438
        %444 = vst [vmem:[%s440 + $0x18] sm:$0xff] %v439
        %s445 = scalar_lea.vmem %s168, 64 [#allocation2]
        %v446 = vld [vmem:[%s445] sm:$0xff]
        %v447 = vld [vmem:[%s445 + $0x8] sm:$0xff]
        %v448 = vld [vmem:[%s445 + $0x10] sm:$0xff]
        %v449 = vld [vmem:[%s445 + $0x18] sm:$0xff]
        %450 = vmatpush.msra.mxu0 0.0
        %451 = vmatpush.msra.mxu0 0.0
        %452 = vmatpush.msra.mxu0 0.0
        %453 = vmatpush.msra.mxu0 0.0
        %454 = vmatpush.msra.mxu0 0.0
        %455 = vmatpush.msra.mxu0 0.0
        %456 = vmatpush.msra.mxu0 0.0
        %457 = vmatpush.msra.mxu0 0.0
        %458 = vmatpush.msra.mxu0 0.0
        %459 = vmatpush.msra.mxu0 0.0
        %460 = vmatpush.msra.mxu0 0.0
        %461 = vmatpush.msra.mxu0 0.0
        %462 = vmatpush.msra.mxu0 0.0
        %463 = vmatpush.msra.mxu0 0.0
        %464 = vmatpush.msra.mxu0 %v449
        %465 = vmatpush.msra.mxu0 %v448
        %466 = vmatmul.f32.gmra.mxu0 %v218
        %v467 = vpop.f32.mrf.mxu0
        %v468 = vadd.f32 %v209, %v467
        %469 = vmatmul.f32.gmra.mxu0 %v221
        %v470 = vpop.f32.mrf.mxu0
        %v471 = vadd.f32 %v214, %v470
        %472 = vdwg.mxu0
        %v473 = vmax.f32 %v468, 0.0
        %v474 = vmax.f32 %v471, 0.0
        %477 = vrot.lane.b32.xlu0 %v473, 1
        %v478 = vpop.permute.xlu0 %477
        %479 = vrot.lane.b32.xlu0 %v474, 1
        %v480 = vpop.permute.xlu0 %479
        %v483 = vsel %vm200, %v478, 0.0
        %v484 = vsel %vm200, %v480, 0.0
        %485 = vrot.lane.b32.xlu0 %v473, 127
        %v486 = vpop.permute.xlu0 %485
        %487 = vrot.lane.b32.xlu0 %v474, 127
        %v488 = vpop.permute.xlu0 %487
        %v491 = vsel %vm201, %v486, 0.0
        %v492 = vsel %vm201, %v488, 0.0
        %v493 = vmul.f32 %v268, %v483
        %v494 = vmul.f32 %v272, %v484
        %v495 = vmul.f32 %v278, %v473
        %v496 = vmul.f32 %v282, %v474
        %v497 = vadd.f32 %v493, %v495
        %v498 = vadd.f32 %v494, %v496
        %v499 = vmul.f32 %v290, %v491
        %v500 = vmul.f32 %v294, %v492
        %v501 = vadd.f32 %v497, %v499
        %v502 = vadd.f32 %v498, %v500
        %v503 = vadd.f32 %v501, %v302
        %v504 = vadd.f32 %v502, %v306
        %505 = vmatpush.msra.mxu0 0.0
        %506 = vmatpush.msra.mxu0 0.0
        %507 = vmatpush.msra.mxu0 0.0
        %508 = vmatpush.msra.mxu0 0.0
        %509 = vmatpush.msra.mxu0 0.0
        %510 = vmatpush.msra.mxu0 0.0
        %511 = vmatpush.msra.mxu0 0.0
        %512 = vmatpush.msra.mxu0 0.0
        %513 = vmatpush.msra.mxu0 0.0
        %514 = vmatpush.msra.mxu0 0.0
        %515 = vmatpush.msra.mxu0 0.0
        %516 = vmatpush.msra.mxu0 0.0
        %517 = vmatpush.msra.mxu0 0.0
        %518 = vmatpush.msra.mxu0 0.0
        %519 = vmatpush.msra.mxu0 %v504
        %520 = vmatpush.msra.mxu0 %v503
        %521 = vmatmul.f32.gmra.mxu0 %v322
        %v522 = vpop.f32.mrf.mxu0
        %v523 = vadd.f32 %v312, %v522
        %524 = vmatmul.f32.gmra.mxu0 %v324
        %v525 = vpop.f32.mrf.mxu0
        %v526 = vadd.f32 %v316, %v525
        %527 = vdwg.mxu0
        %v528 = vmax.f32 %v523, 0.0
        %v529 = vmax.f32 %v526, 0.0
        %s530 = scalar_lea.vmem %s191, 64 [#allocation5]
        %531 = vst [vmem:[%s530] sm:$0xff] %v446
        %532 = vst [vmem:[%s530 + $0x10] sm:$0xff] %v447
        %533 = vst [vmem:[%s530 + $0x8] sm:$0xff] %v528
        %534 = vst [vmem:[%s530 + $0x18] sm:$0xff] %v529
        %s535 = scalar_lea.vmem %s168, 96 [#allocation2]
        %v536 = vld [vmem:[%s535] sm:$0xff]
        %v537 = vld [vmem:[%s535 + $0x8] sm:$0xff]
        %v538 = vld [vmem:[%s535 + $0x10] sm:$0xff]
        %v539 = vld [vmem:[%s535 + $0x18] sm:$0xff]
        %540 = vmatpush.msra.mxu0 0.0
        %541 = vmatpush.msra.mxu0 0.0
        %542 = vmatpush.msra.mxu0 0.0
        %543 = vmatpush.msra.mxu0 0.0
        %544 = vmatpush.msra.mxu0 0.0
        %545 = vmatpush.msra.mxu0 0.0
        %546 = vmatpush.msra.mxu0 0.0
        %547 = vmatpush.msra.mxu0 0.0
        %548 = vmatpush.msra.mxu0 0.0
        %549 = vmatpush.msra.mxu0 0.0
        %550 = vmatpush.msra.mxu0 0.0
        %551 = vmatpush.msra.mxu0 0.0
        %552 = vmatpush.msra.mxu0 0.0
        %553 = vmatpush.msra.mxu0 0.0
        %554 = vmatpush.msra.mxu0 %v539
        %555 = vmatpush.msra.mxu0 %v538
        %556 = vmatmul.f32.gmra.mxu0 %v218
        %v557 = vpop.f32.mrf.mxu0
        %v558 = vadd.f32 %v209, %v557
        %559 = vmatmul.f32.gmra.mxu0 %v221
        %v560 = vpop.f32.mrf.mxu0
        %v561 = vadd.f32 %v214, %v560
        %562 = vdwg.mxu0
        %v563 = vmax.f32 %v558, 0.0
        %v564 = vmax.f32 %v561, 0.0
        %567 = vrot.lane.b32.xlu0 %v563, 1
        %v568 = vpop.permute.xlu0 %567
        %569 = vrot.lane.b32.xlu0 %v564, 1
        %v570 = vpop.permute.xlu0 %569
        %v573 = vsel %vm200, %v568, 0.0
        %v574 = vsel %vm200, %v570, 0.0
        %575 = vrot.lane.b32.xlu0 %v563, 127
        %v576 = vpop.permute.xlu0 %575
        %577 = vrot.lane.b32.xlu0 %v564, 127
        %v578 = vpop.permute.xlu0 %577
        %v581 = vsel %vm201, %v576, 0.0
        %v582 = vsel %vm201, %v578, 0.0
        %v583 = vmul.f32 %v268, %v573
        %v584 = vmul.f32 %v272, %v574
        %v585 = vmul.f32 %v278, %v563
        %v586 = vmul.f32 %v282, %v564
        %v587 = vadd.f32 %v583, %v585
        %v588 = vadd.f32 %v584, %v586
        %v589 = vmul.f32 %v290, %v581
        %v590 = vmul.f32 %v294, %v582
        %v591 = vadd.f32 %v587, %v589
        %v592 = vadd.f32 %v588, %v590
        %v593 = vadd.f32 %v591, %v302
        %v594 = vadd.f32 %v592, %v306
        %595 = vmatpush.msra.mxu0 0.0
        %596 = vmatpush.msra.mxu0 0.0
        %597 = vmatpush.msra.mxu0 0.0
        %598 = vmatpush.msra.mxu0 0.0
        %599 = vmatpush.msra.mxu0 0.0
        %600 = vmatpush.msra.mxu0 0.0
        %601 = vmatpush.msra.mxu0 0.0
        %602 = vmatpush.msra.mxu0 0.0
        %603 = vmatpush.msra.mxu0 0.0
        %604 = vmatpush.msra.mxu0 0.0
        %605 = vmatpush.msra.mxu0 0.0
        %606 = vmatpush.msra.mxu0 0.0
        %607 = vmatpush.msra.mxu0 0.0
        %608 = vmatpush.msra.mxu0 0.0
        %609 = vmatpush.msra.mxu0 %v594
        %610 = vmatpush.msra.mxu0 %v593
        %611 = vmatmul.f32.gmra.mxu0 %v322
        %v612 = vpop.f32.mrf.mxu0
        %v613 = vadd.f32 %v312, %v612
        %614 = vmatmul.f32.gmra.mxu0 %v324
        %v615 = vpop.f32.mrf.mxu0
        %v616 = vadd.f32 %v316, %v615
        %617 = vdwg.mxu0
        %v618 = vmax.f32 %v613, 0.0
        %v619 = vmax.f32 %v616, 0.0
        %s620 = scalar_lea.vmem %s191, 96 [#allocation5]
        %621 = vst [vmem:[%s620] sm:$0xff] %v536
        %622 = vst [vmem:[%s620 + $0x10] sm:$0xff] %v537
        %623 = vst [vmem:[%s620 + $0x8] sm:$0xff] %v618
        %624 = vst [vmem:[%s620 + $0x18] sm:$0xff] %v619
        %s625 = sand.u32 %s96, 1
        %s626 = scalar_lea.sflag [#allocation4], %s625
        %s627 = sand.u32 %s96, 1
        %s628 = smul.addr %s627, 128
        %s629 = scalar_lea.vmem [#allocation5], %s628
        // Predicated region
        $region37: #{tpu_custom_call.1} parent=31 // pred_check
          %p630 = pneg %p106
        $region38: #{tpu_custom_call.1} parent=31 // pred_check_branch
          %632 = sbr.rel (%p630) target = $region40
        $region39: #{tpu_custom_call.1} parent=31 // pred_region
          %s633 = smul.u32 4, %s20
          %635 = vsyncadd %s626, 0
          %s636 = smul.addr %s633, 4
          %s637 = smul.addr %s636, 8
          %s638 = scalar_lea.hbm %s3, %s637
          %s639 = sshll.u32 %s629, 4
          %s640 = int_to_ptr.vmem [resolvable:$true] %s639
          %s641 = sshll.u32 %s638, 4
          %s642 = int_to_ptr.hbm [resolvable:$true] %s641
          %647 = dma.vmem_to_hbm [thread:$0]  %s640, 2048, %s642, %s626, 256, 256, 16
        $region40: #{tpu_custom_call.1} parent=31 // pred_fallthru
          _
      $region32: #{tpu_custom_call.1} parent=5 // pred_fallthru
        _
      %p648 = scmp.le.s32.totalorder 2, %s15
      // Predicated region
      $region41: #{tpu_custom_call.1} parent=5 // pred_check
        %p649 = pneg %p648
      $region42: #{tpu_custom_call.1} parent=5 // pred_check_branch
        %651 = sbr.rel (%p649) target = $region44
      $region43: #{tpu_custom_call.1} parent=5 // pred_region
        %s652 = ssub.s32 %s15, 2
        // Predicated region
        $region45: #{tpu_custom_call.1} parent=43 // pred_check
          %p653 = pneg %p112
        $region46: #{tpu_custom_call.1} parent=43 // pred_check_branch
          %655 = sbr.rel (%p653) target = $region48
        $region47: #{tpu_custom_call.1} parent=43 // pred_region
          %s656 = sand.u32 %s97, 1
          %s657 = scalar_lea.sflag [#allocation4], %s656
          %s658 = sand.u32 %s97, 1
          %s659 = smul.addr %s658, 128
          %s660 = scalar_lea.vmem [#allocation5], %s659
          %662 = dma.done %s657, 2048
        $region48: #{tpu_custom_call.1} parent=43 // pred_fallthru
          _
      $region44: #{tpu_custom_call.1} parent=5 // pred_fallthru
        _
    $region6: #{tpu_custom_call.1} parent=1 // loop_footer
      %s19 = sadd.s32 1, %s15
    $region7: #{tpu_custom_call.1} parent=1 // loop_footer_branch
      %14 = sbr.rel target = $region3
    $region8: #{tpu_custom_call.1} parent=1 // loop_exit
      _
    %663 = vsyncpa [#allocation3], 1
    %s664 = scalar_lea.sflag [#allocation3], 1
    %665 = vsyncpa %s664, 1
    %666 = vsyncpa [#allocation4], 1
    %s667 = scalar_lea.sflag [#allocation4], 1
    %668 = vsyncpa %s667, 1

</llo_original>
